<compile_context>
chip_gen: v5e
topology: v5e:2x2
jax: 0.10.0
libtpu: 0.0.40
codegen_flags: <defaults>
</compile_context>

<pallas_src>
from enum import Enum
from typing import List, Optional, Sequence, Tuple

import jax
import jax.numpy as jnp
from jax.experimental import pallas as pl
from jax.experimental.pallas import tpu as pltpu


class TokenEmbedding(Enum):
    """Determine what to do with the hidden states of the encoder layers."""
    SUM = 2
    AVG = 3
    CAT = 4
    BERT = 5


# ----------------------------- kernel ----------------------------------------


def _make_layer_reduce_kernel(num_layers: int, strategy: int):
    """Build a kernel over L per-layer refs + 1 output ref.

    Each x_ref is a (TN, H) block of one layer's hidden states; o_ref is
    (TN, H) for SUM/AVG or (TN, L*H) for CAT.
    """
    inv_l = 1.0 / float(num_layers)

    def kernel(*refs):
        x_refs = refs[:num_layers]
        o_ref = refs[num_layers]

        if strategy == TokenEmbedding.CAT.value:
            h = x_refs[0].shape[-1]
            for l, xr in enumerate(x_refs):
                # Static lane-slice store per layer (fully lane-aligned and
                # unmasked when H % 128 == 0).
                o_ref[:, l * h:(l + 1) * h] = xr[...]
        else:
            # f32 accumulation with a single running accumulator: per-layer
            # elementwise adds on the VPU, no (L, TN, H) f32 temporary.
            acc = x_refs[0][...].astype(jnp.float32)
            for xr in x_refs[1:]:
                acc = acc + xr[...].astype(jnp.float32)
            if strategy == TokenEmbedding.AVG.value:
                acc = acc * inv_l
            o_ref[...] = acc.astype(o_ref.dtype)

    return kernel


def _pick_row_block(n_rows: int, in_cols_total: int, out_cols: int,
                    itemsize: int, vmem_budget_bytes: int = 8 << 20) -> int:
    """Largest row block (multiple of 8) whose double-buffered inputs + output
    fit the VMEM budget (conservative vs. default scoped limits on
    v5e/v6e/v7x)."""
    per_row = 2 * (in_cols_total + out_cols) * itemsize
    tn = vmem_budget_bytes // max(per_row, 1)
    tn = max(8, (tn // 8) * 8)
    if tn >= n_rows:
        return n_rows                      # full extent is always legal
    return tn


# ----------------------------- wrapper ----------------------------------------


def token_embedder(
    hidden_states: Sequence[jax.Array],
    sequence_output: Optional[Tuple[jax.Array, ...]] = None,
    select_hidden_layers: Optional[List[int]] = None,
    attention_mask: Optional[jax.Array] = None,   # unused, kept for API parity
    token_emb_strategy: int = TokenEmbedding.AVG.value,
) -> jax.Array:
    """JAX/Pallas equivalent of TokenEmbedder.forward."""
    del attention_mask  # not used by the reference forward

    # BERT pooler: pass the transformer's pooled output straight through.
    if token_emb_strategy == TokenEmbedding.BERT.value:
        return sequence_output[1]

    hs = list(hidden_states)
    if select_hidden_layers:
        hs = [hs[i] for i in select_hidden_layers]

    L = len(hs)
    B, S, H = hs[0].shape
    dtype = hs[0].dtype

    # Unknown strategy: mirror the reference (stack + permute, no reduction).
    if token_emb_strategy not in (
        TokenEmbedding.SUM.value,
        TokenEmbedding.AVG.value,
        TokenEmbedding.CAT.value,
    ):
        return jnp.transpose(jnp.stack(hs, axis=0), (1, 2, 0, 3))

    N = B * S
    out_cols = L * H if token_emb_strategy == TokenEmbedding.CAT.value else H

    # Free reshapes (leading dims merged, lane dim untouched): no HBM copy.
    flat_layers = [x.reshape(N, H) for x in hs]

    itemsize = jnp.dtype(dtype).itemsize
    tn = _pick_row_block(N, L * H, out_cols, itemsize)
    grid = (pl.cdiv(N, tn),)

    kernel = _make_layer_reduce_kernel(L, token_emb_strategy)

    in_specs = [pl.BlockSpec((tn, H), lambda n: (n, 0)) for _ in range(L)]
    out_specs = pl.BlockSpec((tn, out_cols), lambda n: (n, 0))

    flops = 0 if token_emb_strategy == TokenEmbedding.CAT.value else L * N * H
    cost = pl.CostEstimate(
        flops=flops,
        transcendentals=0,
        bytes_accessed=(L * N * H + N * out_cols) * itemsize,
    )

    out = pl.pallas_call(
        kernel,
        out_shape=jax.ShapeDtypeStruct((N, out_cols), dtype),
        grid=grid,
        in_specs=in_specs,
        out_specs=out_specs,
        compiler_params=pltpu.CompilerParams(
            dimension_semantics=("parallel",),
        ),
        cost_estimate=cost,
    )(*flat_layers)

    return out.reshape(B, S, out_cols)


# ----------------------------- reference --------------------------------------


def _reference(hidden_states, sequence_output, select_hidden_layers, strategy):
    if strategy == TokenEmbedding.BERT.value:
        return sequence_output[1]
    te = jnp.stack(list(hidden_states), axis=0)            # (L, B, S, H)
    if select_hidden_layers:
        te = te[jnp.array(select_hidden_layers)]
    te = jnp.transpose(te, (1, 2, 0, 3))                    # (B, S, L, H)
    if strategy == TokenEmbedding.AVG.value:
        return jnp.mean(te, axis=2)
    if strategy == TokenEmbedding.SUM.value:
        return jnp.sum(te, axis=2)
    if strategy == TokenEmbedding.CAT.value:
        b, s, l, h = te.shape
        return te.reshape(b, s, l * h)
    return te


# ----------------------------- main --------------------------------------------


if __name__ == "__main__":
    key = jax.random.PRNGKey(0)
    L, B, S, H = 4, 2, 8, 32

    layer_keys = jax.random.split(key, L + 1)
    hidden_states = tuple(
        jax.random.normal(layer_keys[i], (B, S, H), dtype=jnp.float32)
        for i in range(L)
    )
    # Fake transformer output: (last_hidden_state, pooled_output).
    pooled = jax.random.normal(layer_keys[L], (B, H), dtype=jnp.float32)
    sequence_output = (hidden_states[-1], pooled)

    ok = True
    for strat in (
        TokenEmbedding.SUM.value,
        TokenEmbedding.AVG.value,
        TokenEmbedding.CAT.value,
    ):
        # All layers.
        out = token_embedder(hidden_states, sequence_output, None, None, strat)
        out = jax.block_until_ready(out)
        ref = _reference(hidden_states, sequence_output, None, strat)
        ok &= bool(jnp.allclose(out, ref, atol=1e-5, rtol=1e-5))

        # With layer selection.
        sel = [1, 3]
        out_s = token_embedder(hidden_states, sequence_output, sel, None, strat)
        out_s = jax.block_until_ready(out_s)
        ref_s = _reference(hidden_states, sequence_output, sel, strat)
        ok &= bool(jnp.allclose(out_s, ref_s, atol=1e-5, rtol=1e-5))

    # BERT pooler passthrough (no kernel needed).
    out_b = token_embedder(
        hidden_states, sequence_output, None, None, TokenEmbedding.BERT.value
    )
    out_b = jax.block_until_ready(out_b)
    ok &= bool(jnp.allclose(out_b, pooled))

    print("KERNEL_OK" if ok else "KERNEL_MISMATCH")
</pallas_src>

<mosaic_0001>
module attributes {stable_mosaic.version = 11 : i64} {
  func.func @kernel(%arg0: i32, %arg1: memref<16x32xf32, #tpu.memory_space<vmem>>, %arg2: memref<16x32xf32, #tpu.memory_space<vmem>>, %arg3: memref<16x32xf32, #tpu.memory_space<vmem>>, %arg4: memref<16x32xf32, #tpu.memory_space<vmem>>, %arg5: memref<16x32xf32, #tpu.memory_space<vmem>>) attributes {dimension_semantics = [#tpu.dimension_semantics<parallel>], iteration_bounds = array<i64: 1>, scalar_prefetch = 0 : i64, scratch_operands = 0 : i64, tpu.core_type = #tpu.core_type<tc>, window_params = [{transform_indices = @transform_0, window_bounds = array<i64: 16, 32>}, {transform_indices = @transform_1, window_bounds = array<i64: 16, 32>}, {transform_indices = @transform_2, window_bounds = array<i64: 16, 32>}, {transform_indices = @transform_3, window_bounds = array<i64: 16, 32>}, {transform_indices = @transform_4, window_bounds = array<i64: 16, 32>}]} {
    %c0 = arith.constant 0 : index
    %c0_0 = arith.constant 0 : index
    %0 = vector.load %arg1[%c0, %c0_0] : memref<16x32xf32, #tpu.memory_space<vmem>>, vector<16x32xf32>
    %c0_1 = arith.constant 0 : index
    %c0_2 = arith.constant 0 : index
    %1 = vector.load %arg2[%c0_1, %c0_2] : memref<16x32xf32, #tpu.memory_space<vmem>>, vector<16x32xf32>
    %2 = arith.addf %0, %1 : vector<16x32xf32>
    %c0_3 = arith.constant 0 : index
    %c0_4 = arith.constant 0 : index
    %3 = vector.load %arg3[%c0_3, %c0_4] : memref<16x32xf32, #tpu.memory_space<vmem>>, vector<16x32xf32>
    %4 = arith.addf %2, %3 : vector<16x32xf32>
    %c0_5 = arith.constant 0 : index
    %c0_6 = arith.constant 0 : index
    %5 = vector.load %arg4[%c0_5, %c0_6] : memref<16x32xf32, #tpu.memory_space<vmem>>, vector<16x32xf32>
    %6 = arith.addf %4, %5 : vector<16x32xf32>
    %c0_7 = arith.constant 0 : index
    %c0_8 = arith.constant 0 : index
    %7 = vector.load %arg5[%c0_7, %c0_8] : memref<16x32xf32, #tpu.memory_space<vmem>>, vector<16x32xf32>
    tpu.vector_store %arg5[%c0_7, %c0_8], %6 {strides = array<i32>} : memref<16x32xf32, #tpu.memory_space<vmem>>, vector<16x32xf32>,
    return
  }
  func.func @transform_0(%arg0: i32) -> (i32, i32) {
    %c0_i32 = arith.constant 0 : i32
    %c0_i32_0 = arith.constant 0 : i32
    return %arg0, %c0_i32 : i32, i32
  }
  func.func @transform_1(%arg0: i32) -> (i32, i32) {
    %c0_i32 = arith.constant 0 : i32
    %c0_i32_0 = arith.constant 0 : i32
    return %arg0, %c0_i32 : i32, i32
  }
  func.func @transform_2(%arg0: i32) -> (i32, i32) {
    %c0_i32 = arith.constant 0 : i32
    %c0_i32_0 = arith.constant 0 : i32
    return %arg0, %c0_i32 : i32, i32
  }
  func.func @transform_3(%arg0: i32) -> (i32, i32) {
    %c0_i32 = arith.constant 0 : i32
    %c0_i32_0 = arith.constant 0 : i32
    return %arg0, %c0_i32 : i32, i32
  }
  func.func @transform_4(%arg0: i32) -> (i32, i32) {
    %c0_i32 = arith.constant 0 : i32
    %c0_i32_0 = arith.constant 0 : i32
    return %arg0, %c0_i32 : i32, i32
  }
}

</mosaic_0001>

<llo_original>
// kernel: tpu_custom_call.1
$region0: #{tpu_custom_call.1}
  #allocation0 [shape = 'u32[]', space=smem, size = 0x4, offset = 0x4, fixed_abs, tag = 'smem constant byte address 0x4 - core index']
  #allocation1 [shape = 'u32[72,128]{1,0:T(1,128)}', space=vmem, size = 0x9000, scoped, tag = 'internal scratch']
  %s0 = inlined_call_operand.hbm [shape: f32[16,32], index: 0, kind: input, shape index: {}]
  %s1 = inlined_call_operand.hbm [shape: f32[16,32], index: 1, kind: input, shape index: {}]
  %s2 = inlined_call_operand.hbm [shape: f32[16,32], index: 2, kind: input, shape index: {}]
  %s3 = inlined_call_operand.hbm [shape: f32[16,32], index: 3, kind: input, shape index: {}]
  %s4 = inlined_call_operand.hbm [shape: f32[16,32], index: 4, kind: output, shape index: {}]
  %s5 = sld [smem:[#allocation0]]
  $region42: #{tpu_custom_call.1} parent=0
    _
  %s7 = ssub.s32 1, %s5
  %s8 = scalar_select 0, %s7, %s5
  $region1: #{tpu_custom_call.1} parent=0
    #allocation2 [shape = 'u8[8192]{0}', space=vmem, size = 0x2000, scoped, tag = 'input window, operand 0, single buffered']
    #allocation3 [shape = 's32[1]{0}', space=sflag, size = 0x4, scoped, tag = 'scoped memory for tpu_custom_call.1']
    #allocation4 [shape = 's32[1]{0}', space=sflag, size = 0x4, scoped, tag = 'scoped memory for tpu_custom_call.1']
    #allocation5 [shape = 'u8[8192]{0}', space=vmem, size = 0x2000, scoped, tag = 'input window, operand 1, single buffered']
    #allocation6 [shape = 's32[1]{0}', space=sflag, size = 0x4, scoped, tag = 'scoped memory for tpu_custom_call.1']
    #allocation7 [shape = 'u8[8192]{0}', space=vmem, size = 0x2000, scoped, tag = 'input window, operand 2, single buffered']
    #allocation8 [shape = 'u8[8192]{0}', space=vmem, size = 0x2000, scoped, tag = 'input window, operand 3, single buffered']
    #allocation9 [shape = 's32[1]{0}', space=sflag, size = 0x4, scoped, tag = 'scoped memory for tpu_custom_call.1']
    #allocation10 [shape = 'u8[8192]{0}', space=vmem, size = 0x2000, scoped, tag = 'output window, operand 0, single buffered']
    %9 = vsyncpa [#allocation3], 0
    %10 = vsyncpa [#allocation6], 0
    %11 = vsyncpa [#allocation9], 0
    %12 = vsyncpa [#allocation4], 0
    // Predicated region
    $region2: #{tpu_custom_call.1} parent=1 // pred_check
      _
    $region3: #{tpu_custom_call.1} parent=1 // pred_check_branch
      %14 = sbr.rel (0) target = $region5
    $region4: #{tpu_custom_call.1} parent=1 // pred_region
      %16 = vsyncadd [#allocation3], 0
      %s17 = sshll.u32 %s0, 4
      %s18 = int_to_ptr.hbm [resolvable:$true] %s17
      %s19 = sshll.u32 [#allocation2], 4
      %s20 = int_to_ptr.vmem [resolvable:$true] %s19
      %25 = dma.hbm_to_vmem [thread:$0]  %s18, 256, %s20, [#allocation3], 128, 128, 8
    $region5: #{tpu_custom_call.1} parent=1 // pred_fallthru
      _
    // Predicated region
    $region6: #{tpu_custom_call.1} parent=1 // pred_check
      _
    $region7: #{tpu_custom_call.1} parent=1 // pred_check_branch
      %27 = sbr.rel (0) target = $region9
    $region8: #{tpu_custom_call.1} parent=1 // pred_region
      %29 = vsyncadd [#allocation6], 0
      %s30 = sshll.u32 %s1, 4
      %s31 = int_to_ptr.hbm [resolvable:$true] %s30
      %s32 = sshll.u32 [#allocation5], 4
      %s33 = int_to_ptr.vmem [resolvable:$true] %s32
      %38 = dma.hbm_to_vmem [thread:$0]  %s31, 256, %s33, [#allocation6], 128, 128, 8
    $region9: #{tpu_custom_call.1} parent=1 // pred_fallthru
      _
    // Predicated region
    $region10: #{tpu_custom_call.1} parent=1 // pred_check
      _
    $region11: #{tpu_custom_call.1} parent=1 // pred_check_branch
      %40 = sbr.rel (0) target = $region13
    $region12: #{tpu_custom_call.1} parent=1 // pred_region
      %42 = vsyncadd [#allocation6], 0
      %s43 = sshll.u32 %s2, 4
      %s44 = int_to_ptr.hbm [resolvable:$true] %s43
      %s45 = sshll.u32 [#allocation7], 4
      %s46 = int_to_ptr.vmem [resolvable:$true] %s45
      %51 = dma.hbm_to_vmem [thread:$0]  %s44, 256, %s46, [#allocation6], 128, 128, 8
    $region13: #{tpu_custom_call.1} parent=1 // pred_fallthru
      _
    // Predicated region
    $region14: #{tpu_custom_call.1} parent=1 // pred_check
      _
    $region15: #{tpu_custom_call.1} parent=1 // pred_check_branch
      %53 = sbr.rel (0) target = $region17
    $region16: #{tpu_custom_call.1} parent=1 // pred_region
      %55 = vsyncadd [#allocation9], 0
      %s56 = sshll.u32 %s3, 4
      %s57 = int_to_ptr.hbm [resolvable:$true] %s56
      %s58 = sshll.u32 [#allocation8], 4
      %s59 = int_to_ptr.vmem [resolvable:$true] %s58
      %64 = dma.hbm_to_vmem [thread:$0]  %s57, 256, %s59, [#allocation9], 128, 128, 8
    $region17: #{tpu_custom_call.1} parent=1 // pred_fallthru
      _
    // Predicated region
    $region18: #{tpu_custom_call.1} parent=1 // pred_check
      _
    $region19: #{tpu_custom_call.1} parent=1 // pred_check_branch
      %66 = sbr.rel (0) target = $region21
    $region20: #{tpu_custom_call.1} parent=1 // pred_region
      %68 = dma.done [#allocation3], 256
    $region21: #{tpu_custom_call.1} parent=1 // pred_fallthru
      _
    // Predicated region
    $region22: #{tpu_custom_call.1} parent=1 // pred_check
      _
    $region23: #{tpu_custom_call.1} parent=1 // pred_check_branch
      %70 = sbr.rel (0) target = $region25
    $region24: #{tpu_custom_call.1} parent=1 // pred_region
      %72 = dma.done [#allocation6], 256
    $region25: #{tpu_custom_call.1} parent=1 // pred_fallthru
      _
    // Predicated region
    $region26: #{tpu_custom_call.1} parent=1 // pred_check
      _
    $region27: #{tpu_custom_call.1} parent=1 // pred_check_branch
      %74 = sbr.rel (0) target = $region29
    $region28: #{tpu_custom_call.1} parent=1 // pred_region
      %76 = dma.done [#allocation6], 256
    $region29: #{tpu_custom_call.1} parent=1 // pred_fallthru
      _
    // Predicated region
    $region30: #{tpu_custom_call.1} parent=1 // pred_check
      _
    $region31: #{tpu_custom_call.1} parent=1 // pred_check_branch
      %78 = sbr.rel (0) target = $region33
    $region32: #{tpu_custom_call.1} parent=1 // pred_region
      %80 = dma.done [#allocation9], 256
    $region33: #{tpu_custom_call.1} parent=1 // pred_fallthru
      _
    %v81 = vld [vmem:[#allocation2] sm:$0xff]
    %v82 = vld [vmem:[#allocation2 + $0x8] sm:$0xff]
    %v83 = vld [vmem:[#allocation5] sm:$0xff]
    %v84 = vld [vmem:[#allocation5 + $0x8] sm:$0xff]
    %v85 = vadd.f32 %v81, %v83
    %v86 = vadd.f32 %v82, %v84
    %v87 = vld [vmem:[#allocation7] sm:$0xff]
    %v88 = vld [vmem:[#allocation7 + $0x8] sm:$0xff]
    %v89 = vadd.f32 %v85, %v87
    %v90 = vadd.f32 %v86, %v88
    %v91 = vld [vmem:[#allocation8] sm:$0xff]
    %v92 = vld [vmem:[#allocation8 + $0x8] sm:$0xff]
    %v93 = vadd.f32 %v89, %v91
    %v94 = vadd.f32 %v90, %v92
    %vm95 = vcmask 261120
    %96 = vst.msk [vmem:[#allocation10] sm:$0xff] %vm95, %v93
    %97 = vst.msk [vmem:[#allocation10 + $0x8] sm:$0xff] %vm95, %v94
    // Predicated region
    $region34: #{tpu_custom_call.1} parent=1 // pred_check
      _
    $region35: #{tpu_custom_call.1} parent=1 // pred_check_branch
      %99 = sbr.rel (0) target = $region37
    $region36: #{tpu_custom_call.1} parent=1 // pred_region
      %101 = vsyncadd [#allocation4], 0
      %s102 = sshll.u32 [#allocation10], 4
      %s103 = int_to_ptr.vmem [resolvable:$true] %s102
      %s104 = sshll.u32 %s4, 4
      %s105 = int_to_ptr.hbm [resolvable:$true] %s104
      %110 = dma.vmem_to_hbm [thread:$0]  %s103, 256, %s105, [#allocation4], 128, 128, 8
    $region37: #{tpu_custom_call.1} parent=1 // pred_fallthru
      _
    // Predicated region
    $region38: #{tpu_custom_call.1} parent=1 // pred_check
      _
    $region39: #{tpu_custom_call.1} parent=1 // pred_check_branch
      %112 = sbr.rel (0) target = $region41
    $region40: #{tpu_custom_call.1} parent=1 // pred_region
      %114 = dma.done [#allocation4], 256
    $region41: #{tpu_custom_call.1} parent=1 // pred_fallthru
      _
    %115 = vsyncpa [#allocation3], 1
    %116 = vsyncpa [#allocation6], 1
    %117 = vsyncpa [#allocation9], 1
    %118 = vsyncpa [#allocation4], 1

</llo_original>
